<compile_context>
chip_gen: v5e
topology: v5e:2x2
jax: 0.10.0
libtpu: 0.0.40
codegen_flags: <defaults>
</compile_context>

<pallas_src>
import functools
import math

import jax
import jax.numpy as jnp
from jax.experimental import pallas as pl
from jax.experimental.pallas import tpu as pltpu

_MIB = 1024 * 1024


def _round_up(n: int, m: int) -> int:
    return ((n + m - 1) // m) * m


def _physical_vmem_bytes() -> int:
    """Per-core VMEM capacity; conservative 64 MiB (v7x) fallback."""
    try:
        info = pltpu.get_tpu_info()
        v = getattr(info, "vmem_capacity_bytes", None)
        if v:
            return int(v)
    except Exception:
        pass
    return 64 * _MIB


def _rmsnorm_kernel(x_ref, w1_ref, o_ref, *, inv_dim, eps, clamp_min, clamp_max):
    # variance in f32: sum(x^2) * (1/true_dim)  (sum, not mean, so zero-padded
    # lanes on the small-hidden pad path cannot skew it), clamp(min=eps).
    xf = x_ref[...].astype(jnp.float32)
    var = jnp.sum(xf * xf, axis=-1, keepdims=True) * inv_dim      # XLU reduce
    scale = jax.lax.rsqrt(jnp.maximum(var, eps))                  # EUP rsqrt

    # Re-read x instead of keeping the full f32 tile live across the
    # cross-lane reduction (less VMEM scratch / vst traffic; helps v5e & v7x).
    # w1 is (1, dim) f32, already 1 + weight.
    y = x_ref[...].astype(jnp.float32) * scale * w1_ref[...]

    # Downcast first, then clamp/NaN-scrub in the *output* dtype: numerically
    # identical to clamp-then-cast (overflow rounds to inf and clamps back to
    # finfo.max; NaN still propagates) but halves epilogue VALU work for bf16
    # on v6e/v7x.
    y = y.astype(o_ref.dtype)
    lo = jnp.asarray(clamp_min, dtype=o_ref.dtype)
    hi = jnp.asarray(clamp_max, dtype=o_ref.dtype)
    y = jnp.clip(y, lo, hi)
    o_ref[...] = jnp.where(jnp.isnan(y), jnp.asarray(0.0, dtype=o_ref.dtype), y)


def surya_rmsnorm(x, weight, eps: float = 1e-6, row_tile: int | None = None):
    """RMSNorm over the last axis of x, matching SuryaADETRDecoderRMSNorm.forward."""
    orig_shape = x.shape
    dim = int(orig_shape[-1])
    rows = int(math.prod(orig_shape[:-1]))
    x2d = x.reshape(rows, dim)

    itemsize = jnp.dtype(x.dtype).itemsize
    # Sublane granularity: 8 rows for 4-byte dtypes, 16 for bf16, 32 for 1-byte.
    gran = max(8, 32 // itemsize)

    # A block last-dim equal to the full array dim is always legal, so we avoid
    # HBM pad + slice passes except for very small non-128-multiple hidden
    # sizes, where a single pad pass buys lane-dense (unmasked) stores.
    pad_hidden = (dim % 128 != 0) and (dim < 256)
    dim_blk = _round_up(dim, 128) if pad_hidden else dim

    phys_vmem = _physical_vmem_bytes()

    if row_tile is None:
        # Per-step budget for 2x-dbuf in + 2x-dbuf out + f32 temps: ~16 MiB on
        # 128 MiB-VMEM parts (v5e/v6e), ~10 MiB on 64 MiB parts (v7x).
        budget_bytes = max(4 * _MIB, min(16 * _MIB, phys_vmem // 6))
        bytes_per_row = dim_blk * (4 * itemsize + 12)
        rt = budget_bytes // max(1, bytes_per_row)
        row_tile = max(gran, min(8192, (rt // gran) * gran))
        # Prefer >= 8 grid steps (>= 4 per TensorCore on v7x) so prologue /
        # epilogue DMAs are hidden and both cores get work.
        row_tile = min(row_tile, max(gran, _round_up(pl.cdiv(rows, 8), gran)))
    row_tile = max(gran, _round_up(int(row_tile), gran))
    row_tile = min(row_tile, _round_up(rows, gran))

    # Partial last row block is handled by Pallas (OOB reads are per-row
    # garbage but independent; OOB writes are masked) -- no row padding.
    grid = (pl.cdiv(rows, row_tile),)

    if pad_hidden:
        x2d = jnp.pad(x2d, ((0, 0), (0, dim_blk - dim)))

    # Precompute (1 + weight) in f32 once in the wrapper.
    w1 = (1.0 + weight.astype(jnp.float32)).reshape(1, dim)
    if pad_hidden:
        w1 = jnp.pad(w1, ((0, 0), (0, dim_blk - dim)))

    # finfo of the *input* dtype (PyTorch uses torch.finfo(x.dtype)).
    finfo = jnp.finfo(x.dtype)

    kernel = functools.partial(
        _rmsnorm_kernel,
        inv_dim=1.0 / float(dim),
        eps=float(eps),
        clamp_min=float(finfo.min),
        clamp_max=float(finfo.max),
    )

    # Explicit VMEM limit: big enough to keep the bandwidth-optimal tile
    # double-buffered (v5e scoped default is 16 MiB) but clamped below the
    # physical per-core VMEM (64 MiB on v7x).
    tile_bytes = row_tile * dim_blk * (4 * itemsize + 12) + 8 * dim_blk
    vmem_cap = max(24 * _MIB, phys_vmem - 12 * _MIB)
    vmem_limit = int(min(vmem_cap, max(32 * _MIB, 2 * tile_bytes)))

    out2d = pl.pallas_call(
        kernel,
        out_shape=jax.ShapeDtypeStruct((rows, dim_blk), x.dtype),
        grid_spec=pltpu.PrefetchScalarGridSpec(
            num_scalar_prefetch=0,
            grid=grid,
            in_specs=[
                pl.BlockSpec((row_tile, dim_blk), lambda i: (i, 0)),
                pl.BlockSpec((1, dim_blk), lambda i: (0, 0)),
            ],
            out_specs=pl.BlockSpec((row_tile, dim_blk), lambda i: (i, 0)),
        ),
        compiler_params=pltpu.CompilerParams(
            dimension_semantics=("parallel",),
            vmem_limit_bytes=vmem_limit,
        ),
    )(x2d, w1)

    if pad_hidden:
        out2d = out2d[:, :dim]
    return out2d.reshape(orig_shape)


def _reference(x, weight, eps=1e-6):
    xf = x.astype(jnp.float32)
    var = jnp.mean(xf * xf, axis=-1, keepdims=True)
    var = jnp.maximum(var, eps)
    y = xf * jax.lax.rsqrt(var)
    y = y * (1.0 + weight.astype(jnp.float32))
    finfo = jnp.finfo(x.dtype)
    y = jnp.clip(y, float(finfo.min), float(finfo.max))
    y = jnp.where(jnp.isnan(y), 0.0, y)
    return y.astype(x.dtype)


if __name__ == "__main__":
    key = jax.random.PRNGKey(0)
    kx, kw = jax.random.split(key)

    # 1) Small shape matching the module, bf16 input to exercise the float()
    #    upcast / type_as(x) downcast + finfo(bf16) clamp path (small hidden
    #    -> lane pad path).
    batch, seq, hidden = 2, 8, 32
    x = jax.random.normal(kx, (batch, seq, hidden), dtype=jnp.float32).astype(
        jnp.bfloat16
    )
    weight = 0.1 * jax.random.normal(kw, (hidden,), dtype=jnp.float32)

    out = jax.block_until_ready(surya_rmsnorm(x, weight, eps=1e-6))
    ref = _reference(x, weight, eps=1e-6)
    assert out.shape == x.shape and out.dtype == x.dtype
    assert jnp.allclose(
        out.astype(jnp.float32), ref.astype(jnp.float32), atol=1e-2, rtol=1e-2
    ), "mismatch vs reference (bf16, small hidden)"

    # 2) Non-divisible row count + 128-multiple hidden: no pad / no slice,
    #    partial last row-block handled by Pallas write masking.
    x2 = jax.random.normal(kx, (3, 37, 256), dtype=jnp.float32).astype(jnp.bfloat16)
    w2 = 0.05 * jax.random.normal(kw, (256,), dtype=jnp.float32)
    out2 = jax.block_until_ready(surya_rmsnorm(x2, w2, eps=1e-6))
    ref2 = _reference(x2, w2, eps=1e-6)
    assert jnp.allclose(
        out2.astype(jnp.float32), ref2.astype(jnp.float32), atol=1e-2, rtol=1e-2
    ), "mismatch vs reference (partial row block)"

    # 3) Hidden >= 256 that is not a multiple of 128: full-array lane block,
    #    no HBM pad/slice pass, f32 input path.
    x3 = jax.random.normal(kx, (2, 12, 320), dtype=jnp.float32)
    w3 = 0.02 * jax.random.normal(kw, (320,), dtype=jnp.float32)
    out3 = jax.block_until_ready(surya_rmsnorm(x3, w3, eps=1e-6))
    ref3 = _reference(x3, w3, eps=1e-6)
    assert jnp.allclose(
        out3.astype(jnp.float32), ref3.astype(jnp.float32), atol=1e-4, rtol=1e-4
    ), "mismatch vs reference (odd hidden, f32)"

    print("KERNEL_OK")
</pallas_src>

<mosaic_0001>
module attributes {stable_mosaic.version = 11 : i64} {
  func.func @_rmsnorm_kernel(%arg0: i32, %arg1: memref<16x128xbf16, #tpu.memory_space<vmem>>, %arg2: memref<1x128xf32, #tpu.memory_space<vmem>>, %arg3: memref<16x128xbf16, #tpu.memory_space<vmem>>) attributes {dimension_semantics = [#tpu.dimension_semantics<parallel>], iteration_bounds = array<i64: 1>, scalar_prefetch = 0 : i64, scratch_operands = 0 : i64, tpu.core_type = #tpu.core_type<tc>, window_params = [{transform_indices = @transform_0, window_bounds = array<i64: 16, 128>}, {pipeline_mode = #tpu.pipeline_mode<synchronous>, transform_indices = @transform_1, window_bounds = array<i64: 1, 128>}, {transform_indices = @transform_2, window_bounds = array<i64: 16, 128>}]} {
    %c0 = arith.constant 0 : index
    %c0_0 = arith.constant 0 : index
    %0 = vector.load %arg1[%c0, %c0_0] : memref<16x128xbf16, #tpu.memory_space<vmem>>, vector<16x128xbf16>
    %1 = arith.extf %0 : vector<16x128xbf16> to vector<16x128xf32>
    %2 = arith.mulf %1, %1 : vector<16x128xf32>
    %cst = arith.constant dense<0.000000e+00> : vector<16xf32>
    %3 = vector.multi_reduction <add>, %2, %cst [1] : vector<16x128xf32> to vector<16xf32>
    %4 = vector.shape_cast %3 : vector<16xf32> to vector<16x1xf32>
    %cst_1 = arith.constant 3.125000e-02 : f32
    %5 = vector.broadcast %cst_1 : f32 to vector<16x1xf32>
    %6 = arith.mulf %4, %5 : vector<16x1xf32>
    %cst_2 = arith.constant 9.99999997E-7 : f32
    %7 = vector.broadcast %cst_2 : f32 to vector<16x1xf32>
    %8 = arith.maximumf %6, %7 : vector<16x1xf32>
    %9 = math.rsqrt %8 : vector<16x1xf32>
    %c0_3 = arith.constant 0 : index
    %c0_4 = arith.constant 0 : index
    %10 = vector.load %arg1[%c0_3, %c0_4] : memref<16x128xbf16, #tpu.memory_space<vmem>>, vector<16x128xbf16>
    %11 = arith.extf %10 : vector<16x128xbf16> to vector<16x128xf32>
    %12 = vector.broadcast %9 : vector<16x1xf32> to vector<16x128xf32>
    %13 = arith.mulf %11, %12 : vector<16x128xf32>
    %c0_5 = arith.constant 0 : index
    %c0_6 = arith.constant 0 : index
    %14 = vector.load %arg2[%c0_5, %c0_6] : memref<1x128xf32, #tpu.memory_space<vmem>>, vector<1x128xf32>
    %15 = vector.broadcast %14 : vector<1x128xf32> to vector<16x128xf32>
    %16 = arith.mulf %13, %15 : vector<16x128xf32>
    %17 = arith.truncf %16 : vector<16x128xf32> to vector<16x128xbf16>
    %cst_7 = arith.constant -3.389530e+38 : bf16
    %cst_8 = arith.constant 3.389530e+38 : bf16
    %18 = vector.broadcast %cst_7 : bf16 to vector<16x128xbf16>
    %19 = arith.maximumf %18, %17 : vector<16x128xbf16>
    %20 = vector.broadcast %cst_8 : bf16 to vector<16x128xbf16>
    %21 = arith.minimumf %20, %19 : vector<16x128xbf16>
    %22 = arith.cmpf one, %21, %21 : vector<16x128xbf16>
    %cst_9 = arith.constant 0.000000e+00 : bf16
    %23 = vector.broadcast %cst_9 : bf16 to vector<16x128xbf16>
    %24 = arith.select %22, %23, %21 : vector<16x128xi1>, vector<16x128xbf16>
    %c0_10 = arith.constant 0 : index
    %c0_11 = arith.constant 0 : index
    %25 = vector.load %arg3[%c0_10, %c0_11] : memref<16x128xbf16, #tpu.memory_space<vmem>>, vector<16x128xbf16>
    tpu.vector_store %arg3[%c0_10, %c0_11], %24 {strides = array<i32>} : memref<16x128xbf16, #tpu.memory_space<vmem>>, vector<16x128xbf16>,
    return
  }
  func.func @transform_0(%arg0: i32) -> (i32, i32) {
    %c0_i32 = arith.constant 0 : i32
    %c0_i32_0 = arith.constant 0 : i32
    return %arg0, %c0_i32 : i32, i32
  }
  func.func @transform_1(%arg0: i32) -> (i32, i32) {
    %c0_i32 = arith.constant 0 : i32
    %c0_i32_0 = arith.constant 0 : i32
    %c0_i32_1 = arith.constant 0 : i32
    return %c0_i32, %c0_i32_0 : i32, i32
  }
  func.func @transform_2(%arg0: i32) -> (i32, i32) {
    %c0_i32 = arith.constant 0 : i32
    %c0_i32_0 = arith.constant 0 : i32
    return %arg0, %c0_i32 : i32, i32
  }
}

</mosaic_0001>

<llo_original>
// kernel: tpu_custom_call.1
$region0: #{tpu_custom_call.1}
  #allocation0 [shape = 'u32[]', space=smem, size = 0x4, offset = 0x4, fixed_abs, tag = 'smem constant byte address 0x4 - core index']
  #allocation1 [shape = 'u32[72,128]{1,0:T(1,128)}', space=vmem, size = 0x9000, scoped, tag = 'internal scratch']
  %s0 = inlined_call_operand.hbm [shape: bf16[16,128], index: 0, kind: input, shape index: {}]
  %s1 = inlined_call_operand.hbm [shape: f32[1,128], index: 1, kind: input, shape index: {}]
  %s2 = inlined_call_operand.hbm [shape: bf16[16,128], index: 2, kind: output, shape index: {}]
  %s3 = sld [smem:[#allocation0]]
  $region26: #{tpu_custom_call.1} parent=0
    _
  %s5 = ssub.s32 1, %s3
  %s6 = scalar_select 0, %s5, %s3
  $region1: #{tpu_custom_call.1} parent=0
    #allocation2 [shape = 'u8[4096]{0}', space=vmem, size = 0x1000, scoped, tag = 'input window, operand 0, single buffered']
    #allocation3 [shape = 's32[1]{0}', space=sflag, size = 0x4, scoped, tag = 'scoped memory for tpu_custom_call.1']
    #allocation4 [shape = 's32[1]{0}', space=sflag, size = 0x4, scoped, tag = 'scoped memory for tpu_custom_call.1']
    #allocation5 [shape = 'u8[512]{0}', space=vmem, size = 0x400, scoped, tag = 'input window, operand 1, single buffered']
    #allocation6 [shape = 's32[1]{0}', space=sflag, size = 0x4, scoped, tag = 'scoped memory for tpu_custom_call.1']
    #allocation7 [shape = 'u8[4096]{0}', space=vmem, size = 0x1000, scoped, tag = 'output window, operand 0, single buffered']
    %7 = vsyncpa [#allocation3], 0
    %8 = vsyncpa [#allocation6], 0
    %9 = vsyncpa [#allocation4], 0
    // Predicated region
    $region2: #{tpu_custom_call.1} parent=1 // pred_check
      _
    $region3: #{tpu_custom_call.1} parent=1 // pred_check_branch
      %11 = sbr.rel (0) target = $region5
    $region4: #{tpu_custom_call.1} parent=1 // pred_region
      %13 = vsyncadd [#allocation3], 0
      %s14 = sshll.u32 %s0, 4
      %s15 = int_to_ptr.hbm [resolvable:$true] %s14
      %s16 = sshll.u32 [#allocation2], 4
      %s17 = int_to_ptr.vmem [resolvable:$true] %s16
      %22 = dma.hbm_to_vmem [thread:$0]  %s15, 128, %s17, [#allocation3], 64, 64, 4
    $region5: #{tpu_custom_call.1} parent=1 // pred_fallthru
      _
    // Predicated region
    $region6: #{tpu_custom_call.1} parent=1 // pred_check
      _
    $region7: #{tpu_custom_call.1} parent=1 // pred_check_branch
      %24 = sbr.rel (0) target = $region9
    $region8: #{tpu_custom_call.1} parent=1 // pred_region
      %26 = vsyncadd [#allocation6], 0
      %s28 = sshll.u32 %s1, 4
      %s29 = int_to_ptr.hbm [resolvable:$true] %s28
      %s30 = sshll.u32 [#allocation5], 4
      %s31 = int_to_ptr.vmem [resolvable:$true] %s30
      %33 = dma.hbm_to_vmem [thread:$0]  %s29, 16, %s31, [#allocation6]
    $region9: #{tpu_custom_call.1} parent=1 // pred_fallthru
      _
    // Predicated region
    $region10: #{tpu_custom_call.1} parent=1 // pred_check
      _
    $region11: #{tpu_custom_call.1} parent=1 // pred_check_branch
      %35 = sbr.rel (0) target = $region13
    $region12: #{tpu_custom_call.1} parent=1 // pred_region
      %37 = dma.done [#allocation3], 128
    $region13: #{tpu_custom_call.1} parent=1 // pred_fallthru
      _
    // Predicated region
    $region14: #{tpu_custom_call.1} parent=1 // pred_check
      _
    $region15: #{tpu_custom_call.1} parent=1 // pred_check_branch
      %39 = sbr.rel (0) target = $region17
    $region16: #{tpu_custom_call.1} parent=1 // pred_region
      %41 = dma.done [#allocation6], 16
    $region17: #{tpu_custom_call.1} parent=1 // pred_fallthru
      _
    %v43 = vld [vmem:[#allocation2] sm:$0xf]
    %v44 = vld [vmem:[#allocation2 + $0x4] sm:$0xf]
    %v45 = vunpack.c.l.bf16 %v43
    %v46 = vunpack.c.l.bf16 %v44
    %v47 = vmul.f32 %v45, %v45
    %v48 = vmul.f32 %v46, %v46
    %49 = vadd.xlane.f32.xlu0 %v47
    %v50 = vpop.xlane.xlu0 %49
    %51 = vadd.xlane.f32.xlu0 %v48
    %v52 = vpop.xlane.xlu0 %51
    %v53 = vmul.f32 %v50, 0.03125
    %v54 = vmul.f32 %v52, 0.03125
    %v55 = vmax.f32 %v53, 1e-06
    %v56 = vmax.f32 %v54, 1e-06
    %v57 = vrsqrt.pop %v55
    %v58 = vmul.f32 %v57, %v55
    %v59 = vmul.f32 %v58, %v57
    %v60 = vmul.f32 0.5, %v59
    %v61 = vsub.f32 1.5, %v60
    %v62 = vmul.f32 %v57, %v61
    %vm63 = vweird.f32 %v55
    %vm64 = vweird.f32 %v57
    %vm65 = vmor %vm63, %vm64
    %v66 = vsel %vm65, %v57, %v62
    %v67 = vrsqrt.pop %v56
    %v68 = vmul.f32 %v67, %v56
    %v69 = vmul.f32 %v68, %v67
    %v70 = vmul.f32 0.5, %v69
    %v71 = vsub.f32 1.5, %v70
    %v72 = vmul.f32 %v67, %v71
    %vm73 = vweird.f32 %v56
    %vm74 = vweird.f32 %v67
    %vm75 = vmor %vm73, %vm74
    %v76 = vsel %vm75, %v67, %v72
    %v77 = vmul.f32 %v45, %v66
    %v78 = vmul.f32 %v46, %v76
    %v79 = vld [vmem:[#allocation5] sm:$0x1]
    %v81 = vperm.slane %v79, 0
    %v83 = vmul.f32 %v77, %v81
    %v84 = vmul.f32 %v78, %v81
    %v85 = vpack.c.bf16 %v83, %v83
    %v86 = vpack.c.bf16 %v84, %v84
    %v87 = vunpack.c.l.bf16 %v85
    %v88 = vunpack.c.l.bf16 %v86
    %v89 = vmax.f32 %v87, -3.3895314e+38
    %v90 = vmax.f32 %v88, -3.3895314e+38
    %v91 = vpack.c.bf16 %v89, %v89
    %v92 = vpack.c.bf16 %v90, %v90
    %v93 = vunpack.c.l.bf16 %v91
    %v94 = vunpack.c.l.bf16 %v92
    %v95 = vmin.f32 %v93, 3.3895314e+38
    %v96 = vmin.f32 %v94, 3.3895314e+38
    %v97 = vpack.c.bf16 %v95, %v95
    %v98 = vpack.c.bf16 %v96, %v96
    %v99 = vunpack.c.l.bf16 %v97
    %v100 = vunpack.c.l.bf16 %v98
    %vm101 = vcmp.ne.f32.partialorder %v99, %v99
    %vm102 = vcmp.ne.f32.partialorder %v100, %v100
    %vm103 = vmpackc.low %vm101, %vm101
    %vm104 = vmpackc.low %vm102, %vm102
    %v105 = vsel %vm103, 0, %v97
    %v106 = vsel %vm104, 0, %v98
    %107 = vst [vmem:[#allocation7] sm:$0xf] %v105
    %108 = vst [vmem:[#allocation7 + $0x4] sm:$0xf] %v106
    // Predicated region
    $region18: #{tpu_custom_call.1} parent=1 // pred_check
      _
    $region19: #{tpu_custom_call.1} parent=1 // pred_check_branch
      %110 = sbr.rel (0) target = $region21
    $region20: #{tpu_custom_call.1} parent=1 // pred_region
      %112 = vsyncadd [#allocation4], 0
      %s113 = sshll.u32 [#allocation7], 4
      %s114 = int_to_ptr.vmem [resolvable:$true] %s113
      %s115 = sshll.u32 %s2, 4
      %s116 = int_to_ptr.hbm [resolvable:$true] %s115
      %121 = dma.vmem_to_hbm [thread:$0]  %s114, 128, %s116, [#allocation4], 64, 64, 4
    $region21: #{tpu_custom_call.1} parent=1 // pred_fallthru
      _
    // Predicated region
    $region22: #{tpu_custom_call.1} parent=1 // pred_check
      _
    $region23: #{tpu_custom_call.1} parent=1 // pred_check_branch
      %123 = sbr.rel (0) target = $region25
    $region24: #{tpu_custom_call.1} parent=1 // pred_region
      %125 = dma.done [#allocation4], 128
    $region25: #{tpu_custom_call.1} parent=1 // pred_fallthru
      _
    %126 = vsyncpa [#allocation3], 1
    %127 = vsyncpa [#allocation6], 1
    %128 = vsyncpa [#allocation4], 1

</llo_original>
